<compile_context>
chip_gen: v7x
topology: tpu7x:2x2x1
jax: 0.10.0
libtpu: 0.0.40
codegen_flags: <defaults>
</compile_context>

<pallas_src>
import functools

import jax
import jax.numpy as jnp
from jax.experimental import pallas as pl
from jax.experimental.pallas import tpu as pltpu


# ---------------------------------------------------------------------------
# Fused matmul kernel: out = relu?( row_scale? * (A @ B) + bias? )
# Grid = (M/tm, N/tn, K/tk); f32 VMEM accumulator persists across the K axis.
# ---------------------------------------------------------------------------
def _mm_kernel(*refs, apply_relu, add_bias, add_scale):
    it = iter(refs)
    a_ref = next(it)
    b_ref = next(it)
    bias_ref = next(it) if add_bias else None
    scale_ref = next(it) if add_scale else None
    o_ref = next(it)
    acc_ref = next(it)

    @pl.when(pl.program_id(2) == 0)
    def _():
        acc_ref[...] = jnp.zeros_like(acc_ref)

    acc_ref[...] += jnp.dot(a_ref[...], b_ref[...],
                            preferred_element_type=jnp.float32)

    @pl.when(pl.program_id(2) == pl.num_programs(2) - 1)
    def _():
        out = acc_ref[...]
        if add_scale:
            out = out * scale_ref[...]          # (tm, 1) f32 per-row scale
        if add_bias:
            out = out + bias_ref[...]           # (1, tn) f32 bias
        if apply_relu:
            out = jnp.maximum(out, 0.0)
        o_ref[...] = out.astype(o_ref.dtype)


def matmul_fused(a, b, bias=None, row_scale=None, *, apply_relu=False,
                 out_dtype=jnp.float32, tm=128, tn=128, tk=128):
    """Tiled MXU matmul with fused f32 row-scale / bias / ReLU epilogue."""
    m, k = a.shape
    k2, n = b.shape
    assert k == k2
    assert m % tm == 0 and n % tn == 0 and k % tk == 0, \
        "operands must be pre-padded to tile multiples"

    add_bias = bias is not None
    add_scale = row_scale is not None

    inputs = [a, b]
    in_specs = [
        pl.BlockSpec((tm, tk), lambda i, j, kk: (i, kk)),   # A tile
        pl.BlockSpec((tk, tn), lambda i, j, kk: (kk, j)),   # B tile (constant
    ]                                                       # index when tk=K,
    if add_bias:                                            # tn=N -> resident)
        inputs.append(bias)        # (1, n) f32
        in_specs.append(pl.BlockSpec((1, tn), lambda i, j, kk: (0, j)))
    if add_scale:
        inputs.append(row_scale)   # (m, 1) f32
        in_specs.append(pl.BlockSpec((tm, 1), lambda i, j, kk: (i, 0)))

    out_itemsize = jnp.dtype(out_dtype).itemsize
    # Actual double-buffered VMEM usage of this kernel (+ small epilogue refs).
    vmem_bytes = (2 * tm * tk * a.dtype.itemsize
                  + 2 * tk * tn * b.dtype.itemsize
                  + 2 * tm * tn * out_itemsize
                  + tm * tn * 4 + 2 * tn * 4 + 2 * tm * 4)
    vmem_limit = int(max(vmem_bytes + 4 * 2 ** 20, 12 * 2 ** 20))

    cost = pl.CostEstimate(
        flops=2 * m * n * k,
        transcendentals=0,
        bytes_accessed=(m * k * a.dtype.itemsize
                        + k * n * b.dtype.itemsize
                        + m * n * out_itemsize))

    kernel = functools.partial(_mm_kernel, apply_relu=apply_relu,
                               add_bias=add_bias, add_scale=add_scale)

    return pl.pallas_call(
        kernel,
        out_shape=jax.ShapeDtypeStruct((m, n), out_dtype),
        grid=(m // tm, n // tn, k // tk),
        in_specs=in_specs,
        out_specs=pl.BlockSpec((tm, tn), lambda i, j, kk: (i, j)),
        scratch_shapes=[pltpu.VMEM((tm, tn), jnp.float32)],
        compiler_params=pltpu.CompilerParams(
            dimension_semantics=("parallel", "parallel", "arbitrary"),
            vmem_limit_bytes=vmem_limit),
        cost_estimate=cost,
    )(*inputs)


# ---------------------------------------------------------------------------
# Padding / tile-selection helpers
# ---------------------------------------------------------------------------
def _round_up(x, m):
    return (x + m - 1) // m * m


def _pad2(x, m0, m1):
    p0 = _round_up(x.shape[0], m0) - x.shape[0]
    p1 = _round_up(x.shape[1], m1) - x.shape[1]
    if p0 or p1:
        x = jnp.pad(x, ((0, p0), (0, p1)))
    return x


def _pick_tile(dim, preferred):
    """Largest tile <= preferred that divides dim (dim is a 128-multiple)."""
    if dim <= preferred:
        return dim
    for t in (1024, 512, 384, 256, 128):
        if t <= preferred and dim % t == 0:
            return t
    return 128


def _choose_tiles(m_pad, k_pad, n_pad, *, elem_bytes=2,
                  b_budget=8 * 2 ** 20, a_budget=16 * 2 ** 20):
    """Pick (tm, tn, tk) for A[m,k] @ B[k,n].

    If B fits the budget (double-buffered), keep it fully VMEM-resident
    (tk=k, tn=n -> constant B index_map, DMA'd once).  Otherwise use
    256/512-multiple tn/tk.  tm grows to 512 (amortizes grid-step overhead,
    cuts B re-reads) but is bounded so the double-buffered A tile stays small
    enough for v7x's 64 MiB VMEM.
    """
    if 2 * k_pad * n_pad * elem_bytes <= b_budget:
        tn, tk = n_pad, k_pad
    else:
        tk = _pick_tile(k_pad, 512)
        tn = _pick_tile(n_pad, 256)
    max_tm = max(128, a_budget // (2 * tk * elem_bytes))
    tm = _pick_tile(m_pad, min(512, max_tm))
    return tm, tn, tk


# ---------------------------------------------------------------------------
# GCN model (params + one-time adjacency cache + forward)
# ---------------------------------------------------------------------------
def glorot(key, shape):
    fan_in, fan_out = shape
    limit = jnp.sqrt(6.0 / (fan_in + fan_out))
    return jax.random.uniform(key, shape, jnp.float32, -limit, limit)


def init_gcn_params(key, in_dim, hid_dim, out_dim, num_layers):
    dims = [in_dim] + [hid_dim] * (num_layers - 1) + [out_dim]
    params = []
    for li in range(num_layers):
        key, wk = jax.random.split(key)
        w = glorot(wk, (dims[li], dims[li + 1]))
        b = jnp.zeros((dims[li + 1],), jnp.float32)
        params.append((w, b))
    return params


def precompute_gcn_cache(adj, *, mxu_dtype=jnp.bfloat16):
    """One-time preprocessing (== GCNConv(cached=True) normalization cache).

    Returns (A-hat padded in an exact narrow dtype, padded f32 d^-1/2 column).
    Padded rows/cols are zero so padded nodes never contaminate real rows.
    """
    n = adj.shape[0]
    m_pad = _round_up(max(n, 128), 128)
    a_hat = adj + jnp.eye(n, dtype=adj.dtype)            # 0/1 entries -> exact
    deg = jnp.sum(a_hat, axis=1)
    d_inv_sqrt = jnp.where(deg > 0, 1.0 / jnp.sqrt(deg), 0.0)
    a_hat_p = jnp.pad(a_hat, ((0, m_pad - n), (0, m_pad - n))).astype(mxu_dtype)
    dinv_p = jnp.pad(d_inv_sqrt, (0, m_pad - n)).reshape(m_pad, 1)
    return a_hat_p, dinv_p.astype(jnp.float32)


def gcn_forward(params, x, cache, *, mxu_dtype=jnp.bfloat16):
    """Forward pass of the GCN stack (inference; dropout == identity)."""
    a_hat_p, dinv_p = cache
    m_pad = a_hat_p.shape[0]
    n = x.shape[0]
    out_dim = params[-1][0].shape[1]
    num_layers = len(params)
    abytes = jnp.dtype(mxu_dtype).itemsize

    # Pad activations once (N x F — cheap); adjacency prep is already cached.
    h = _pad2(x, 1, 128)
    h = jnp.pad(h, ((0, m_pad - n), (0, 0))).astype(mxu_dtype)

    for li, (w, b) in enumerate(params):
        f_in, f_out = w.shape
        f_in_p = _round_up(f_in, 128)
        f_out_p = _round_up(f_out, 128)
        last = li == num_layers - 1
        w_p = _pad2(w, 128, 128).astype(mxu_dtype)
        b_p = jnp.pad(b, (0, f_out_p - f_out)).astype(jnp.float32).reshape(1, -1)
        out_dtype = jnp.float32 if last else mxu_dtype

        if f_in < f_out:
            # (A-hat @ X) @ W — cheaper N^2 term when F_in < F_out.
            # Right degree scale applied to X rows (cheap N x F elementwise),
            # left degree scale fused into the aggregation epilogue.
            h_pre = (h * dinv_p).astype(mxu_dtype)
            tm, tn, tk = _choose_tiles(m_pad, m_pad, f_in_p, elem_bytes=abytes)
            u = matmul_fused(a_hat_p, h_pre, row_scale=dinv_p,
                             out_dtype=mxu_dtype, tm=tm, tn=tn, tk=tk)
            tm2, tn2, tk2 = _choose_tiles(m_pad, f_in_p, f_out_p,
                                          elem_bytes=abytes)
            h = matmul_fused(u, w_p, bias=b_p, apply_relu=not last,
                             out_dtype=out_dtype, tm=tm2, tn=tn2, tk=tk2)
        else:
            # A-hat @ (X @ W) — X@W computed once; right degree scale fused
            # into its epilogue, left degree scale + bias + ReLU fused into
            # the aggregation epilogue.
            tm, tn, tk = _choose_tiles(m_pad, f_in_p, f_out_p,
                                       elem_bytes=abytes)
            t = matmul_fused(h, w_p, row_scale=dinv_p,
                             out_dtype=mxu_dtype, tm=tm, tn=tn, tk=tk)
            tm2, tn2, tk2 = _choose_tiles(m_pad, m_pad, f_out_p,
                                          elem_bytes=abytes)
            h = matmul_fused(a_hat_p, t, bias=b_p, row_scale=dinv_p,
                             apply_relu=not last, out_dtype=out_dtype,
                             tm=tm2, tn=tn2, tk=tk2)
        # Inference-mode dropout == identity.

    return h[:n, :out_dim]


# ---------------------------------------------------------------------------
# Pure-JAX f32 reference (GCNConv semantics) for correctness checking
# ---------------------------------------------------------------------------
def normalize_adj(adj):
    n = adj.shape[0]
    a_hat = adj + jnp.eye(n, dtype=adj.dtype)
    deg = jnp.sum(a_hat, axis=1)
    d_inv_sqrt = jnp.where(deg > 0, 1.0 / jnp.sqrt(deg), 0.0)
    return a_hat * d_inv_sqrt[:, None] * d_inv_sqrt[None, :]


def gcn_reference(params, x, adj_norm):
    h = x
    for li, (w, b) in enumerate(params):
        h = adj_norm @ (h @ w) + b
        if li < len(params) - 1:
            h = jnp.maximum(h, 0.0)
    return h


if __name__ == "__main__":
    # Small shapes consistent with the module: N nodes, feature dims.
    N, IN_DIM, HID_DIM, OUT_DIM, NUM_LAYERS = 16, 8, 32, 4, 3

    key = jax.random.PRNGKey(0)
    kx, ka, kp = jax.random.split(key, 3)

    x = jax.random.normal(kx, (N, IN_DIM), jnp.float32)

    # Deterministic random symmetric binary adjacency (self loops added in the
    # cached normalization step).
    a_rand = jax.random.uniform(ka, (N, N))
    adj = (a_rand + a_rand.T > 1.0).astype(jnp.float32)
    adj = adj * (1.0 - jnp.eye(N))

    params = init_gcn_params(kp, IN_DIM, HID_DIM, OUT_DIM, NUM_LAYERS)

    # One-time adjacency cache (== GCNConv(cached=True)), reused every forward.
    cache = precompute_gcn_cache(adj)

    out = gcn_forward(params, x, cache)
    out = jax.block_until_ready(out)
    assert out.shape == (N, OUT_DIM)

    # bf16 MXU inputs with f32 accumulation and exact f32 normalization scales.
    ref = gcn_reference(params, x, normalize_adj(adj))
    rel_err = float(jnp.max(jnp.abs(out - ref)) /
                    (jnp.max(jnp.abs(ref)) + 1e-6))
    assert rel_err < 0.1, f"relative error too large: {rel_err}"

    print("KERNEL_OK")
</pallas_src>

<mosaic_0001>
module attributes {stable_mosaic.version = 11 : i64} {
  func.func @_mm_kernel(%arg0: i32, %arg1: i32, %arg2: i32, %arg3: memref<128x128xbf16, #tpu.memory_space<vmem>>, %arg4: memref<128x128xbf16, #tpu.memory_space<vmem>>, %arg5: memref<128x1xf32, #tpu.memory_space<vmem>>, %arg6: memref<128x128xbf16, #tpu.memory_space<vmem>>, %arg7: memref<128x128xf32, #tpu.memory_space<vmem>>) attributes {dimension_semantics = [#tpu.dimension_semantics<parallel>, #tpu.dimension_semantics<parallel>, #tpu.dimension_semantics<arbitrary>], iteration_bounds = array<i64: 1, 1, 1>, scalar_prefetch = 0 : i64, scratch_operands = 1 : i64, tpu.core_type = #tpu.core_type<tc>, window_params = [{transform_indices = @transform_0, window_bounds = array<i64: 128, 128>}, {transform_indices = @transform_1, window_bounds = array<i64: 128, 128>}, {transform_indices = @transform_2, window_bounds = array<i64: 128, 1>}, {transform_indices = @transform_3, window_bounds = array<i64: 128, 128>}]} {
    %c0_i32 = arith.constant 0 : i32
    %0 = arith.cmpi eq, %arg2, %c0_i32 : i32
    %1 = arith.extui %0 : i1 to i32
    %c0_i32_0 = arith.constant 0 : i32
    %2 = arith.cmpi ne, %1, %c0_i32_0 : i32
    scf.if %2 {
      %cst_10 = arith.constant 0.000000e+00 : f32
      %12 = vector.broadcast %cst_10 : f32 to vector<128x128xf32>
      %c0_11 = arith.constant 0 : index
      %c0_12 = arith.constant 0 : index
      %13 = vector.load %arg7[%c0_11, %c0_12] : memref<128x128xf32, #tpu.memory_space<vmem>>, vector<128x128xf32>
      tpu.vector_store %arg7[%c0_11, %c0_12], %12 {strides = array<i32>} : memref<128x128xf32, #tpu.memory_space<vmem>>, vector<128x128xf32>,
    } else {
    }
    %c0 = arith.constant 0 : index
    %c0_1 = arith.constant 0 : index
    %3 = vector.load %arg7[%c0, %c0_1] : memref<128x128xf32, #tpu.memory_space<vmem>>, vector<128x128xf32>
    %c0_2 = arith.constant 0 : index
    %c0_3 = arith.constant 0 : index
    %4 = vector.load %arg3[%c0_2, %c0_3] : memref<128x128xbf16, #tpu.memory_space<vmem>>, vector<128x128xbf16>
    %c0_4 = arith.constant 0 : index
    %c0_5 = arith.constant 0 : index
    %5 = vector.load %arg4[%c0_4, %c0_5] : memref<128x128xbf16, #tpu.memory_space<vmem>>, vector<128x128xbf16>
    %cst = arith.constant dense<0.000000e+00> : vector<128x128xf32>
    %6 = tpu.matmul %4, %5, %cst {dimension_numbers = #tpu.dot_dimension_numbers<[1], [0], [0], [1], [0, 0, 1, 1], [], []>} : vector<128x128xbf16>, vector<128x128xbf16>, vector<128x128xf32> -> vector<128x128xf32>
    %7 = arith.addf %3, %6 : vector<128x128xf32>
    %c0_6 = arith.constant 0 : index
    %c0_7 = arith.constant 0 : index
    %8 = vector.load %arg7[%c0_6, %c0_7] : memref<128x128xf32, #tpu.memory_space<vmem>>, vector<128x128xf32>
    tpu.vector_store %arg7[%c0_6, %c0_7], %7 {strides = array<i32>} : memref<128x128xf32, #tpu.memory_space<vmem>>, vector<128x128xf32>,
    %c0_i32_8 = arith.constant 0 : i32
    %9 = arith.cmpi eq, %arg2, %c0_i32_8 : i32
    %10 = arith.extui %9 : i1 to i32
    %c0_i32_9 = arith.constant 0 : i32
    %11 = arith.cmpi ne, %10, %c0_i32_9 : i32
    scf.if %11 {
      %c0_10 = arith.constant 0 : index
      %c0_11 = arith.constant 0 : index
      %12 = vector.load %arg7[%c0_10, %c0_11] : memref<128x128xf32, #tpu.memory_space<vmem>>, vector<128x128xf32>
      %c0_12 = arith.constant 0 : index
      %c0_13 = arith.constant 0 : index
      %13 = vector.load %arg5[%c0_12, %c0_13] : memref<128x1xf32, #tpu.memory_space<vmem>>, vector<128x1xf32>
      %14 = vector.broadcast %13 : vector<128x1xf32> to vector<128x128xf32>
      %15 = arith.mulf %12, %14 : vector<128x128xf32>
      %16 = arith.truncf %15 : vector<128x128xf32> to vector<128x128xbf16>
      %c0_14 = arith.constant 0 : index
      %c0_15 = arith.constant 0 : index
      %17 = vector.load %arg6[%c0_14, %c0_15] : memref<128x128xbf16, #tpu.memory_space<vmem>>, vector<128x128xbf16>
      tpu.vector_store %arg6[%c0_14, %c0_15], %16 {strides = array<i32>} : memref<128x128xbf16, #tpu.memory_space<vmem>>, vector<128x128xbf16>,
    } else {
    }
    return
  }
  func.func @transform_0(%arg0: i32, %arg1: i32, %arg2: i32) -> (i32, i32) {
    %c0_i32 = arith.constant 0 : i32
    return %arg0, %arg2 : i32, i32
  }
  func.func @transform_1(%arg0: i32, %arg1: i32, %arg2: i32) -> (i32, i32) {
    %c0_i32 = arith.constant 0 : i32
    return %arg2, %arg1 : i32, i32
  }
  func.func @transform_2(%arg0: i32, %arg1: i32, %arg2: i32) -> (i32, i32) {
    %c0_i32 = arith.constant 0 : i32
    %c0_i32_0 = arith.constant 0 : i32
    return %arg0, %c0_i32 : i32, i32
  }
  func.func @transform_3(%arg0: i32, %arg1: i32, %arg2: i32) -> (i32, i32) {
    %c0_i32 = arith.constant 0 : i32
    return %arg0, %arg1 : i32, i32
  }
}

</mosaic_0001>

<llo_original>
// kernel: tpu_custom_call.1
$region0: #{tpu_custom_call.1}
  #allocation0 [shape = 'u32[]', space=smem, size = 0x4, offset = 0x4, fixed_abs, tag = 'smem constant byte address 0x4 - core index']
  #allocation1 [shape = 'u32[144,128]{1,0:T(1,128)}', space=vmem, size = 0x12000, scoped, tag = 'internal scratch']
  #allocation2 [shape = 'f32[128,128]{1,0:T(8,128)}', space=vmem, size = 0x10000, scoped, tag = 'scratch operand']
  %s0 = inlined_call_operand.vmem [shape: bf16[128,128], index: 0, kind: input, shape index: {}]
  %s1 = inlined_call_operand.vmem [shape: bf16[128,128], index: 1, kind: input, shape index: {}]
  %s2 = inlined_call_operand.vmem [shape: f32[128,1], index: 2, kind: input, shape index: {}]
  %s3 = inlined_call_operand.hbm [shape: bf16[128,128], index: 3, kind: output, shape index: {}]
  %s4 = sld [smem:[#allocation0]]
  $region30: #{tpu_custom_call.1} parent=0
    _
  %s6 = ssub.s32 1, %s4
  %s7 = scalar_select 0, %s6, %s4
  $region1: #{tpu_custom_call.1} parent=0
    #allocation3 [shape = 'u8[32768]{0}', space=vmem, size = 0x8000, scoped, tag = 'output window, operand 0, single buffered']
    #allocation4 [shape = 's32[1]{0}', space=sflag, size = 0x4, scoped, tag = 'scoped memory for tpu_custom_call.1']
    %8 = vsyncpa [#allocation4], 0
    // Predicated region
    $region2: #{tpu_custom_call.1} parent=1 // pred_check
      _
    $region3: #{tpu_custom_call.1} parent=1 // pred_check_branch
      %10 = sbr.rel (0) target = $region5
    $region4: #{tpu_custom_call.1} parent=1 // pred_region
      _
    $region5: #{tpu_custom_call.1} parent=1 // pred_fallthru
      _
    // Predicated region
    $region6: #{tpu_custom_call.1} parent=1 // pred_check
      _
    $region7: #{tpu_custom_call.1} parent=1 // pred_check_branch
      %12 = sbr.rel (0) target = $region9
    $region8: #{tpu_custom_call.1} parent=1 // pred_region
      _
    $region9: #{tpu_custom_call.1} parent=1 // pred_fallthru
      _
    // Predicated region
    $region10: #{tpu_custom_call.1} parent=1 // pred_check
      _
    $region11: #{tpu_custom_call.1} parent=1 // pred_check_branch
      %14 = sbr.rel (0) target = $region13
    $region12: #{tpu_custom_call.1} parent=1 // pred_region
      _
    $region13: #{tpu_custom_call.1} parent=1 // pred_fallthru
      _
    %p16 = scmp.eq.s32.totalorder 0, 0
    // Predicated region
    $region14: #{tpu_custom_call.1} parent=1 // pred_check
      %p17 = pneg %p16
    $region15: #{tpu_custom_call.1} parent=1 // pred_check_branch
      %19 = sbr.rel (%p17) target = $region17
    $region16: #{tpu_custom_call.1} parent=1 // pred_region
      %20 = vst [vmem:[#allocation2] sm:$0xff] 0.0
      %21 = vst [vmem:[#allocation2 + $0x8] sm:$0xff] 0.0
      %22 = vst [vmem:[#allocation2 + $0x10] sm:$0xff] 0.0
      %23 = vst [vmem:[#allocation2 + $0x18] sm:$0xff] 0.0
      %24 = vst [vmem:[#allocation2 + $0x20] sm:$0xff] 0.0
      %25 = vst [vmem:[#allocation2 + $0x28] sm:$0xff] 0.0
      %26 = vst [vmem:[#allocation2 + $0x30] sm:$0xff] 0.0
      %27 = vst [vmem:[#allocation2 + $0x38] sm:$0xff] 0.0
      %28 = vst [vmem:[#allocation2 + $0x40] sm:$0xff] 0.0
      %29 = vst [vmem:[#allocation2 + $0x48] sm:$0xff] 0.0
      %30 = vst [vmem:[#allocation2 + $0x50] sm:$0xff] 0.0
      %31 = vst [vmem:[#allocation2 + $0x58] sm:$0xff] 0.0
      %32 = vst [vmem:[#allocation2 + $0x60] sm:$0xff] 0.0
      %33 = vst [vmem:[#allocation2 + $0x68] sm:$0xff] 0.0
      %34 = vst [vmem:[#allocation2 + $0x70] sm:$0xff] 0.0
      %35 = vst [vmem:[#allocation2 + $0x78] sm:$0xff] 0.0
    $region17: #{tpu_custom_call.1} parent=1 // pred_fallthru
      _
    %v36 = vld [vmem:[#allocation2] sm:$0xff]
    %v37 = vld [vmem:[#allocation2 + $0x8] sm:$0xff]
    %v38 = vld [vmem:[#allocation2 + $0x10] sm:$0xff]
    %v39 = vld [vmem:[#allocation2 + $0x18] sm:$0xff]
    %v40 = vld [vmem:[#allocation2 + $0x20] sm:$0xff]
    %v41 = vld [vmem:[#allocation2 + $0x28] sm:$0xff]
    %v42 = vld [vmem:[#allocation2 + $0x30] sm:$0xff]
    %v43 = vld [vmem:[#allocation2 + $0x38] sm:$0xff]
    %v44 = vld [vmem:[#allocation2 + $0x40] sm:$0xff]
    %v45 = vld [vmem:[#allocation2 + $0x48] sm:$0xff]
    %v46 = vld [vmem:[#allocation2 + $0x50] sm:$0xff]
    %v47 = vld [vmem:[#allocation2 + $0x58] sm:$0xff]
    %v48 = vld [vmem:[#allocation2 + $0x60] sm:$0xff]
    %v49 = vld [vmem:[#allocation2 + $0x68] sm:$0xff]
    %v50 = vld [vmem:[#allocation2 + $0x70] sm:$0xff]
    %v51 = vld [vmem:[#allocation2 + $0x78] sm:$0xff]
    %v52 = vld [vmem:[%s0] sm:$0xf]
    %v53 = vld [vmem:[%s0 + $0x4] sm:$0xf]
    %v54 = vld [vmem:[%s0 + $0x8] sm:$0xf]
    %v55 = vld [vmem:[%s0 + $0xc] sm:$0xf]
    %v56 = vld [vmem:[%s0 + $0x10] sm:$0xf]
    %v57 = vld [vmem:[%s0 + $0x14] sm:$0xf]
    %v58 = vld [vmem:[%s0 + $0x18] sm:$0xf]
    %v59 = vld [vmem:[%s0 + $0x1c] sm:$0xf]
    %v60 = vld [vmem:[%s0 + $0x20] sm:$0xf]
    %v61 = vld [vmem:[%s0 + $0x24] sm:$0xf]
    %v62 = vld [vmem:[%s0 + $0x28] sm:$0xf]
    %v63 = vld [vmem:[%s0 + $0x2c] sm:$0xf]
    %v64 = vld [vmem:[%s0 + $0x30] sm:$0xf]
    %v65 = vld [vmem:[%s0 + $0x34] sm:$0xf]
    %v66 = vld [vmem:[%s0 + $0x38] sm:$0xf]
    %v67 = vld [vmem:[%s0 + $0x3c] sm:$0xf]
    %v68 = vld [vmem:[%s1] sm:$0xf]
    %v69 = vld [vmem:[%s1 + $0x4] sm:$0xf]
    %v70 = vld [vmem:[%s1 + $0x8] sm:$0xf]
    %v71 = vld [vmem:[%s1 + $0xc] sm:$0xf]
    %v72 = vld [vmem:[%s1 + $0x10] sm:$0xf]
    %v73 = vld [vmem:[%s1 + $0x14] sm:$0xf]
    %v74 = vld [vmem:[%s1 + $0x18] sm:$0xf]
    %v75 = vld [vmem:[%s1 + $0x1c] sm:$0xf]
    %v76 = vld [vmem:[%s1 + $0x20] sm:$0xf]
    %v77 = vld [vmem:[%s1 + $0x24] sm:$0xf]
    %v78 = vld [vmem:[%s1 + $0x28] sm:$0xf]
    %v79 = vld [vmem:[%s1 + $0x2c] sm:$0xf]
    %v80 = vld [vmem:[%s1 + $0x30] sm:$0xf]
    %v81 = vld [vmem:[%s1 + $0x34] sm:$0xf]
    %v82 = vld [vmem:[%s1 + $0x38] sm:$0xf]
    %v83 = vld [vmem:[%s1 + $0x3c] sm:$0xf]
    %v100 = vunpack.c.l.b16 %v52
    %v101 = vunpack.c.l.b16 %v53
    %v102 = vunpack.c.l.b16 %v54
    %v103 = vunpack.c.l.b16 %v55
    %v104 = vunpack.c.l.b16 %v56
    %v105 = vunpack.c.l.b16 %v57
    %v106 = vunpack.c.l.b16 %v58
    %v107 = vunpack.c.l.b16 %v59
    %v108 = vunpack.c.l.b16 %v60
    %v109 = vunpack.c.l.b16 %v61
    %v110 = vunpack.c.l.b16 %v62
    %v111 = vunpack.c.l.b16 %v63
    %v112 = vunpack.c.l.b16 %v64
    %v113 = vunpack.c.l.b16 %v65
    %v114 = vunpack.c.l.b16 %v66
    %v115 = vunpack.c.l.b16 %v67
    %v116 = vpack.c.b16 %v101, %v100
    %v117 = vpack.c.b16 %v103, %v102
    %v118 = vpack.c.b16 %v105, %v104
    %v119 = vpack.c.b16 %v107, %v106
    %v120 = vpack.c.b16 %v109, %v108
    %v121 = vpack.c.b16 %v111, %v110
    %v122 = vpack.c.b16 %v113, %v112
    %v123 = vpack.c.b16 %v115, %v114
    %v148 = vunpack.c.l.b16 %v68
    %v149 = vunpack.c.l.b16 %v69
    %v150 = vunpack.c.l.b16 %v70
    %v151 = vunpack.c.l.b16 %v71
    %v152 = vunpack.c.l.b16 %v72
    %v153 = vunpack.c.l.b16 %v73
    %v154 = vunpack.c.l.b16 %v74
    %v155 = vunpack.c.l.b16 %v75
    %v156 = vunpack.c.l.b16 %v76
    %v157 = vunpack.c.l.b16 %v77
    %v158 = vunpack.c.l.b16 %v78
    %v159 = vunpack.c.l.b16 %v79
    %v160 = vunpack.c.l.b16 %v80
    %v161 = vunpack.c.l.b16 %v81
    %v162 = vunpack.c.l.b16 %v82
    %v163 = vunpack.c.l.b16 %v83
    %v164 = vpack.c.b16 %v149, %v148
    %v165 = vpack.c.b16 %v151, %v150
    %v166 = vpack.c.b16 %v153, %v152
    %v167 = vpack.c.b16 %v155, %v154
    %v168 = vpack.c.b16 %v157, %v156
    %v169 = vpack.c.b16 %v159, %v158
    %v170 = vpack.c.b16 %v161, %v160
    %v171 = vpack.c.b16 %v163, %v162
    %180 = vmatprep.subr.bf16.mxu0 0
    %181 = vmatpush1.bf16.msra.mxu0 %v164
    %182 = vmatprep.subr.bf16.mxu0 0
    %183 = vmatpush1.bf16.msra.mxu0 %v165
    %184 = vmatprep.subr.bf16.mxu0 0
    %185 = vmatpush1.bf16.msra.mxu0 %v166
    %186 = vmatprep.subr.bf16.mxu0 0
    %187 = vmatpush1.bf16.msra.mxu0 %v167
    %188 = vmatprep.subr.bf16.mxu0 0
    %189 = vmatpush1.bf16.msra.mxu0 %v168
    %190 = vmatprep.subr.bf16.mxu0 0
    %191 = vmatpush1.bf16.msra.mxu0 %v169
    %192 = vmatprep.subr.bf16.mxu0 0
    %193 = vmatpush1.bf16.msra.mxu0 %v170
    %194 = vmatprep.subr.bf16.mxu0 0
    %195 = vmatpush1.bf16.msra.mxu0 %v171
    %196 = vmatprep.subr.bf16.mxu0 0
    %197 = vmatpush1.bf16.msra.mxu0 0
    %198 = vmatprep.subr.bf16.mxu0 0
    %199 = vmatpush1.bf16.msra.mxu0 0
    %200 = vmatprep.subr.bf16.mxu0 0
    %201 = vmatpush1.bf16.msra.mxu0 0
    %202 = vmatprep.subr.bf16.mxu0 0
    %203 = vmatpush1.bf16.msra.mxu0 0
    %204 = vmatprep.subr.bf16.mxu0 0
    %205 = vmatpush1.bf16.msra.mxu0 0
    %206 = vmatprep.subr.bf16.mxu0 0
    %207 = vmatpush1.bf16.msra.mxu0 0
    %208 = vmatprep.subr.bf16.mxu0 0
    %209 = vmatpush1.bf16.msra.mxu0 0
    %210 = vmatprep.subr.bf16.mxu0 0
    %211 = vmatpush1.bf16.msra.mxu0 0
    %212 = vmatprep.mubr.bf16.mxu0 0
    %213 = vmatmul.mubr.bf16.gmra.mrb[0].mxu0 %v116
    %v214 = vpop.f32.mrb[0].mxu0
    %v215 = vadd.f32 0.0, %v214
    %v216 = vpop.f32.mrb[0].mxu0
    %v217 = vpop.f32.mrb[0].mxu0
    %v218 = vadd.f32 0.0, %v217
    %v219 = vpop.f32.mrb[0].mxu0
    %220 = vmatprep.mubr.bf16.mxu0 0
    %221 = vmatmul.mubr.bf16.gmra.mrb[0].mxu0 %v117
    %v222 = vpop.f32.mrb[0].mxu0
    %v223 = vadd.f32 0.0, %v222
    %v224 = vpop.f32.mrb[0].mxu0
    %v225 = vpop.f32.mrb[0].mxu0
    %v226 = vadd.f32 0.0, %v225
    %v227 = vpop.f32.mrb[0].mxu0
    %228 = vmatprep.mubr.bf16.mxu0 0
    %229 = vmatmul.mubr.bf16.gmra.mrb[0].mxu0 %v118
    %v230 = vpop.f32.mrb[0].mxu0
    %v231 = vadd.f32 0.0, %v230
    %v232 = vpop.f32.mrb[0].mxu0
    %v233 = vpop.f32.mrb[0].mxu0
    %v234 = vadd.f32 0.0, %v233
    %v235 = vpop.f32.mrb[0].mxu0
    %236 = vmatprep.mubr.bf16.mxu0 0
    %237 = vmatmul.mubr.bf16.gmra.mrb[0].mxu0 %v119
    %v238 = vpop.f32.mrb[0].mxu0
    %v239 = vadd.f32 0.0, %v238
    %v240 = vpop.f32.mrb[0].mxu0
    %v241 = vpop.f32.mrb[0].mxu0
    %v242 = vadd.f32 0.0, %v241
    %v243 = vpop.f32.mrb[0].mxu0
    %244 = vmatprep.mubr.bf16.mxu0 0
    %245 = vmatmul.mubr.bf16.gmra.mrb[0].mxu0 %v120
    %v246 = vpop.f32.mrb[0].mxu0
    %v247 = vadd.f32 0.0, %v246
    %v248 = vpop.f32.mrb[0].mxu0
    %v249 = vpop.f32.mrb[0].mxu0
    %v250 = vadd.f32 0.0, %v249
    %v251 = vpop.f32.mrb[0].mxu0
    %252 = vmatprep.mubr.bf16.mxu0 0
    %253 = vmatmul.mubr.bf16.gmra.mrb[0].mxu0 %v121
    %v254 = vpop.f32.mrb[0].mxu0
    %v255 = vadd.f32 0.0, %v254
    %v256 = vpop.f32.mrb[0].mxu0
    %v257 = vpop.f32.mrb[0].mxu0
    %v258 = vadd.f32 0.0, %v257
    %v259 = vpop.f32.mrb[0].mxu0
    %260 = vmatprep.mubr.bf16.mxu0 0
    %261 = vmatmul.mubr.bf16.gmra.mrb[0].mxu0 %v122
    %v262 = vpop.f32.mrb[0].mxu0
    %v263 = vadd.f32 0.0, %v262
    %v264 = vpop.f32.mrb[0].mxu0
    %v265 = vpop.f32.mrb[0].mxu0
    %v266 = vadd.f32 0.0, %v265
    %v267 = vpop.f32.mrb[0].mxu0
    %268 = vmatprep.mubr.bf16.mxu0 0
    %269 = vmatmul.mubr.bf16.gmra.mrb[0].mxu0 %v123
    %v270 = vpop.f32.mrb[0].mxu0
    %v271 = vadd.f32 0.0, %v270
    %v272 = vpop.f32.mrb[0].mxu0
    %v273 = vpop.f32.mrb[0].mxu0
    %v274 = vadd.f32 0.0, %v273
    %v275 = vpop.f32.mrb[0].mxu0
    %276 = vdwg.mxu0
    %v277 = vadd.f32 %v36, %v215
    %v278 = vadd.f32 %v37, %v218
    %v279 = vadd.f32 %v38, %v223
    %v280 = vadd.f32 %v39, %v226
    %v281 = vadd.f32 %v40, %v231
    %v282 = vadd.f32 %v41, %v234
    %v283 = vadd.f32 %v42, %v239
    %v284 = vadd.f32 %v43, %v242
    %v285 = vadd.f32 %v44, %v247
    %v286 = vadd.f32 %v45, %v250
    %v287 = vadd.f32 %v46, %v255
    %v288 = vadd.f32 %v47, %v258
    %v289 = vadd.f32 %v48, %v263
    %v290 = vadd.f32 %v49, %v266
    %v291 = vadd.f32 %v50, %v271
    %v292 = vadd.f32 %v51, %v274
    %293 = vst [vmem:[#allocation2] sm:$0xff] %v277
    %294 = vst [vmem:[#allocation2 + $0x8] sm:$0xff] %v278
    %295 = vst [vmem:[#allocation2 + $0x10] sm:$0xff] %v279
    %296 = vst [vmem:[#allocation2 + $0x18] sm:$0xff] %v280
    %297 = vst [vmem:[#allocation2 + $0x20] sm:$0xff] %v281
    %298 = vst [vmem:[#allocation2 + $0x28] sm:$0xff] %v282
    %299 = vst [vmem:[#allocation2 + $0x30] sm:$0xff] %v283
    %300 = vst [vmem:[#allocation2 + $0x38] sm:$0xff] %v284
    %301 = vst [vmem:[#allocation2 + $0x40] sm:$0xff] %v285
    %302 = vst [vmem:[#allocation2 + $0x48] sm:$0xff] %v286
    %303 = vst [vmem:[#allocation2 + $0x50] sm:$0xff] %v287
    %304 = vst [vmem:[#allocation2 + $0x58] sm:$0xff] %v288
    %305 = vst [vmem:[#allocation2 + $0x60] sm:$0xff] %v289
    %306 = vst [vmem:[#allocation2 + $0x68] sm:$0xff] %v290
    %307 = vst [vmem:[#allocation2 + $0x70] sm:$0xff] %v291
    %308 = vst [vmem:[#allocation2 + $0x78] sm:$0xff] %v292
    // Predicated region
    $region18: #{tpu_custom_call.1} parent=1 // pred_check
      %p309 = pneg %p16
    $region19: #{tpu_custom_call.1} parent=1 // pred_check_branch
      %311 = sbr.rel (%p309) target = $region21
    $region20: #{tpu_custom_call.1} parent=1 // pred_region
      %v312 = vld [vmem:[#allocation2] sm:$0xff]
      %v313 = vld [vmem:[#allocation2 + $0x8] sm:$0xff]
      %v314 = vld [vmem:[#allocation2 + $0x10] sm:$0xff]
      %v315 = vld [vmem:[#allocation2 + $0x18] sm:$0xff]
      %v316 = vld [vmem:[#allocation2 + $0x20] sm:$0xff]
      %v317 = vld [vmem:[#allocation2 + $0x28] sm:$0xff]
      %v318 = vld [vmem:[#allocation2 + $0x30] sm:$0xff]
      %v319 = vld [vmem:[#allocation2 + $0x38] sm:$0xff]
      %v320 = vld [vmem:[#allocation2 + $0x40] sm:$0xff]
      %v321 = vld [vmem:[#allocation2 + $0x48] sm:$0xff]
      %v322 = vld [vmem:[#allocation2 + $0x50] sm:$0xff]
      %v323 = vld [vmem:[#allocation2 + $0x58] sm:$0xff]
      %v324 = vld [vmem:[#allocation2 + $0x60] sm:$0xff]
      %v325 = vld [vmem:[#allocation2 + $0x68] sm:$0xff]
      %v326 = vld [vmem:[#allocation2 + $0x70] sm:$0xff]
      %v327 = vld [vmem:[#allocation2 + $0x78] sm:$0xff]
      %v328 = vld [vmem:[%s2] sm:$0xff]
      %v329 = vld [vmem:[%s2 + $0x8] sm:$0xff]
      %v330 = vld [vmem:[%s2 + $0x10] sm:$0xff]
      %v331 = vld [vmem:[%s2 + $0x18] sm:$0xff]
      %v332 = vld [vmem:[%s2 + $0x20] sm:$0xff]
      %v333 = vld [vmem:[%s2 + $0x28] sm:$0xff]
      %v334 = vld [vmem:[%s2 + $0x30] sm:$0xff]
      %v335 = vld [vmem:[%s2 + $0x38] sm:$0xff]
      %v336 = vld [vmem:[%s2 + $0x40] sm:$0xff]
      %v337 = vld [vmem:[%s2 + $0x48] sm:$0xff]
      %v338 = vld [vmem:[%s2 + $0x50] sm:$0xff]
      %v339 = vld [vmem:[%s2 + $0x58] sm:$0xff]
      %v340 = vld [vmem:[%s2 + $0x60] sm:$0xff]
      %v341 = vld [vmem:[%s2 + $0x68] sm:$0xff]
      %v342 = vld [vmem:[%s2 + $0x70] sm:$0xff]
      %v343 = vld [vmem:[%s2 + $0x78] sm:$0xff]
      %345 = vset.pattern.permute.xlu0 0
      %346 = vperm.xlu0 %345, %v328
      %v347 = vpop.permute.xlu0 %346
      %350 = vset.pattern.permute.xlu0 0
      %351 = vperm.xlu0 %350, %v329
      %v352 = vpop.permute.xlu0 %351
      %355 = vset.pattern.permute.xlu0 0
      %356 = vperm.xlu0 %355, %v330
      %v357 = vpop.permute.xlu0 %356
      %360 = vset.pattern.permute.xlu0 0
      %361 = vperm.xlu0 %360, %v331
      %v362 = vpop.permute.xlu0 %361
      %365 = vset.pattern.permute.xlu0 0
      %366 = vperm.xlu0 %365, %v332
      %v367 = vpop.permute.xlu0 %366
      %370 = vset.pattern.permute.xlu0 0
      %371 = vperm.xlu0 %370, %v333
      %v372 = vpop.permute.xlu0 %371
      %375 = vset.pattern.permute.xlu0 0
      %376 = vperm.xlu0 %375, %v334
      %v377 = vpop.permute.xlu0 %376
      %380 = vset.pattern.permute.xlu0 0
      %381 = vperm.xlu0 %380, %v335
      %v382 = vpop.permute.xlu0 %381
      %385 = vset.pattern.permute.xlu0 0
      %386 = vperm.xlu0 %385, %v336
      %v387 = vpop.permute.xlu0 %386
      %390 = vset.pattern.permute.xlu0 0
      %391 = vperm.xlu0 %390, %v337
      %v392 = vpop.permute.xlu0 %391
      %395 = vset.pattern.permute.xlu0 0
      %396 = vperm.xlu0 %395, %v338
      %v397 = vpop.permute.xlu0 %396
      %400 = vset.pattern.permute.xlu0 0
      %401 = vperm.xlu0 %400, %v339
      %v402 = vpop.permute.xlu0 %401
      %405 = vset.pattern.permute.xlu0 0
      %406 = vperm.xlu0 %405, %v340
      %v407 = vpop.permute.xlu0 %406
      %410 = vset.pattern.permute.xlu0 0
      %411 = vperm.xlu0 %410, %v341
      %v412 = vpop.permute.xlu0 %411
      %415 = vset.pattern.permute.xlu0 0
      %416 = vperm.xlu0 %415, %v342
      %v417 = vpop.permute.xlu0 %416
      %420 = vset.pattern.permute.xlu0 0
      %421 = vperm.xlu0 %420, %v343
      %v422 = vpop.permute.xlu0 %421
      %v424 = vmul.f32 %v312, %v347
      %v425 = vmul.f32 %v313, %v352
      %v426 = vmul.f32 %v314, %v357
      %v427 = vmul.f32 %v315, %v362
      %v428 = vmul.f32 %v316, %v367
      %v429 = vmul.f32 %v317, %v372
      %v430 = vmul.f32 %v318, %v377
      %v431 = vmul.f32 %v319, %v382
      %v432 = vmul.f32 %v320, %v387
      %v433 = vmul.f32 %v321, %v392
      %v434 = vmul.f32 %v322, %v397
      %v435 = vmul.f32 %v323, %v402
      %v436 = vmul.f32 %v324, %v407
      %v437 = vmul.f32 %v325, %v412
      %v438 = vmul.f32 %v326, %v417
      %v439 = vmul.f32 %v327, %v422
      %v440 = vpack.c.bf16 %v425, %v424
      %v441 = vpack.c.bf16 %v427, %v426
      %v442 = vpack.c.bf16 %v429, %v428
      %v443 = vpack.c.bf16 %v431, %v430
      %v444 = vpack.c.bf16 %v433, %v432
      %v445 = vpack.c.bf16 %v435, %v434
      %v446 = vpack.c.bf16 %v437, %v436
      %v447 = vpack.c.bf16 %v439, %v438
      %v456 = vunpack.c.l.b16 %v440
      %v457 = vunpack.c.h.b16 %v440
      %v458 = vunpack.c.l.b16 %v441
      %v459 = vunpack.c.h.b16 %v441
      %v460 = vunpack.c.l.b16 %v442
      %v461 = vunpack.c.h.b16 %v442
      %v462 = vunpack.c.l.b16 %v443
      %v463 = vunpack.c.h.b16 %v443
      %v464 = vunpack.c.l.b16 %v444
      %v465 = vunpack.c.h.b16 %v444
      %v466 = vunpack.c.l.b16 %v445
      %v467 = vunpack.c.h.b16 %v445
      %v468 = vunpack.c.l.b16 %v446
      %v469 = vunpack.c.h.b16 %v446
      %v470 = vunpack.c.l.b16 %v447
      %v471 = vunpack.c.h.b16 %v447
      %v472 = vpack.c.b16 %v456, %v456
      %v473 = vpack.c.b16 %v457, %v457
      %v474 = vpack.c.b16 %v458, %v458
      %v475 = vpack.c.b16 %v459, %v459
      %v476 = vpack.c.b16 %v460, %v460
      %v477 = vpack.c.b16 %v461, %v461
      %v478 = vpack.c.b16 %v462, %v462
      %v479 = vpack.c.b16 %v463, %v463
      %v480 = vpack.c.b16 %v464, %v464
      %v481 = vpack.c.b16 %v465, %v465
      %v482 = vpack.c.b16 %v466, %v466
      %v483 = vpack.c.b16 %v467, %v467
      %v484 = vpack.c.b16 %v468, %v468
      %v485 = vpack.c.b16 %v469, %v469
      %v486 = vpack.c.b16 %v470, %v470
      %v487 = vpack.c.b16 %v471, %v471
      %504 = vst [vmem:[#allocation3] sm:$0xf] %v472
      %505 = vst [vmem:[#allocation3 + $0x4] sm:$0xf] %v473
      %506 = vst [vmem:[#allocation3 + $0x8] sm:$0xf] %v474
      %507 = vst [vmem:[#allocation3 + $0xc] sm:$0xf] %v475
      %508 = vst [vmem:[#allocation3 + $0x10] sm:$0xf] %v476
      %509 = vst [vmem:[#allocation3 + $0x14] sm:$0xf] %v477
      %510 = vst [vmem:[#allocation3 + $0x18] sm:$0xf] %v478
      %511 = vst [vmem:[#allocation3 + $0x1c] sm:$0xf] %v479
      %512 = vst [vmem:[#allocation3 + $0x20] sm:$0xf] %v480
      %513 = vst [vmem:[#allocation3 + $0x24] sm:$0xf] %v481
      %514 = vst [vmem:[#allocation3 + $0x28] sm:$0xf] %v482
      %515 = vst [vmem:[#allocation3 + $0x2c] sm:$0xf] %v483
      %516 = vst [vmem:[#allocation3 + $0x30] sm:$0xf] %v484
      %517 = vst [vmem:[#allocation3 + $0x34] sm:$0xf] %v485
      %518 = vst [vmem:[#allocation3 + $0x38] sm:$0xf] %v486
      %519 = vst [vmem:[#allocation3 + $0x3c] sm:$0xf] %v487
    $region21: #{tpu_custom_call.1} parent=1 // pred_fallthru
      _
    // Predicated region
    $region22: #{tpu_custom_call.1} parent=1 // pred_check
      _
    $region23: #{tpu_custom_call.1} parent=1 // pred_check_branch
      %521 = sbr.rel (0) target = $region25
    $region24: #{tpu_custom_call.1} parent=1 // pred_region
      %s523 = ssub.s32 1024, 1024
      %524 = vsyncadd [#allocation4], %s523
      %s525 = sshll.u32 [#allocation3], 4
      %s526 = int_to_ptr.vmem [resolvable:$true] %s525
      %531 = dma.vmem_to_hbm [thread:$0]  %s526, 1024, %s3, [#allocation4], 64, 64, 4
    $region25: #{tpu_custom_call.1} parent=1 // pred_fallthru
      _
    // Predicated region
    $region26: #{tpu_custom_call.1} parent=1 // pred_check
      _
    $region27: #{tpu_custom_call.1} parent=1 // pred_check_branch
      %533 = sbr.rel (0) target = $region29
    $region28: #{tpu_custom_call.1} parent=1 // pred_region
      %534 = dma.done [#allocation4], 1024
    $region29: #{tpu_custom_call.1} parent=1 // pred_fallthru
      _
    %535 = vsyncpa [#allocation4], 1

</llo_original>
